<compile_context>
chip_gen: v7x
topology: tpu7x:2x2x1
jax: 0.10.0
libtpu: 0.0.40
codegen_flags: <defaults>
</compile_context>

<pallas_src>
import jax
import jax.numpy as jnp
from jax.experimental import pallas as pl
from jax.experimental.pallas import tpu as pltpu

DIM = 2               # feature dim of vec_cur / vec_prds (matches `dim = 2`)
OUT = 2               # Linear output features
IN_FEATS = DIM + 2    # Linear input features (dim + 2 == 4)
LANE = 128            # TPU lane width


def _round_up(x, m):
    return ((x + m - 1) // m) * m


def gnn_kernel(w_ref, cur_ref, prds_ref, out_ref):
    """w_ref: SMEM f32[OUT*IN_FEATS] (agg half pre-scaled by 1/P),
       cur_ref: (DIM, TB), prds_ref: (P, DIM, TB), out_ref: (OUT, TB)."""
    cur = cur_ref[...].astype(jnp.float32)                    # (DIM, TB)
    # Plain sum over predecessors; 1/P is already folded into the weights.
    agg = jnp.sum(prds_ref[...].astype(jnp.float32), axis=0)  # (DIM, TB)

    # Unrolled VPU multiply-accumulate:
    #   out[o, :] = sum_k w[o,k]*cur[k,:] + sum_k w[o,DIM+k]*agg[k,:]
    rows = []
    for o in range(OUT):
        acc = w_ref[o * IN_FEATS + 0] * cur[0:1, :]
        for k in range(1, DIM):
            acc = acc + w_ref[o * IN_FEATS + k] * cur[k:k + 1, :]
        for k in range(DIM):
            acc = acc + w_ref[o * IN_FEATS + DIM + k] * agg[k:k + 1, :]
        rows.append(acc)
    out_ref[...] = jnp.concatenate(rows, axis=0).astype(out_ref.dtype)


def gnn_forward(vec_cur, vec_prds, weight, *, batch_tile=1024):
    """vec_cur: (B, DIM), vec_prds: (B, P, DIM), weight: torch-style (OUT, DIM+2)."""
    B, D = vec_cur.shape
    _, P, D2 = vec_prds.shape
    assert D == DIM and D2 == DIM and weight.shape == (OUT, IN_FEATS)

    # Fold mean's 1/P into the aggregation half of the weight; flatten for SMEM.
    w = weight.astype(jnp.float32)
    w_scaled = jnp.concatenate([w[:, :DIM], w[:, DIM:] * (1.0 / P)], axis=1)
    w_flat = jnp.reshape(w_scaled, (-1,))                      # (OUT*IN_FEATS,)

    # Batch-in-lanes layout, padded so the lane dim is a multiple of the tile.
    tb = max(LANE, min(_round_up(batch_tile, LANE), _round_up(B, LANE)))
    b_pad = _round_up(B, tb)
    grid = (b_pad // tb,)

    cur_t = jnp.pad(jnp.transpose(vec_cur, (1, 0)),            # (DIM, B) -> (DIM, Bpad)
                    ((0, 0), (0, b_pad - B)))
    prds_t = jnp.pad(jnp.transpose(vec_prds, (1, 2, 0)),       # (P, DIM, B) -> (P, DIM, Bpad)
                     ((0, 0), (0, 0), (0, b_pad - B)))

    out_t = pl.pallas_call(
        gnn_kernel,
        out_shape=jax.ShapeDtypeStruct((OUT, b_pad), jnp.float32),
        grid=grid,
        in_specs=[
            pl.BlockSpec(memory_space=pltpu.MemorySpace.SMEM),       # weights (scalars)
            pl.BlockSpec((DIM, tb), lambda i: (0, i)),               # vec_cur^T
            pl.BlockSpec((P, DIM, tb), lambda i: (0, 0, i)),         # vec_prds^T
        ],
        out_specs=pl.BlockSpec((OUT, tb), lambda i: (0, i)),
        compiler_params=pltpu.CompilerParams(
            dimension_semantics=("parallel",)),
    )(w_flat, cur_t, prds_t)

    return jnp.transpose(out_t[:, :B], (1, 0))                  # (B, OUT)


def _reference(vec_cur, vec_prds, weight):
    agged = jnp.mean(vec_prds, axis=1)
    concat = jnp.concatenate([vec_cur, agged], axis=1)
    return concat @ weight.T


if __name__ == "__main__":
    key = jax.random.PRNGKey(0)
    k_cur, k_prds, k_w, k_cur2, k_prds2 = jax.random.split(key, 5)

    # Small shapes consistent with the module (B=8 rows, P=8 predecessors, dim=2).
    B, P = 8, 8
    vec_cur = jax.random.normal(k_cur, (B, DIM), dtype=jnp.float32)
    vec_prds = jax.random.normal(k_prds, (B, P, DIM), dtype=jnp.float32)
    weight = jax.random.uniform(
        k_w, (OUT, IN_FEATS), dtype=jnp.float32, minval=-0.5, maxval=0.5)

    out = jax.block_until_ready(gnn_forward(vec_cur, vec_prds, weight))
    expected = _reference(vec_cur, vec_prds, weight)
    assert out.shape == (B, OUT)
    assert jnp.allclose(out, expected, atol=1e-5, rtol=1e-5)

    # Second check: batch larger than one lane tile -> exercises grid > 1 and
    # the parallel/pipelined batch axis plus the padded-lane slicing.
    B2, P2 = 300, 5
    vec_cur2 = jax.random.normal(k_cur2, (B2, DIM), dtype=jnp.float32)
    vec_prds2 = jax.random.normal(k_prds2, (B2, P2, DIM), dtype=jnp.float32)
    out2 = jax.block_until_ready(
        gnn_forward(vec_cur2, vec_prds2, weight, batch_tile=128))
    expected2 = _reference(vec_cur2, vec_prds2, weight)
    assert out2.shape == (B2, OUT)
    assert jnp.allclose(out2, expected2, atol=1e-5, rtol=1e-5)

    print("KERNEL_OK")
</pallas_src>

<mosaic_0001>
module attributes {stable_mosaic.version = 11 : i64} {
  func.func @gnn_kernel(%arg0: i32, %arg1: memref<8xf32, #tpu.memory_space<smem>>, %arg2: memref<2x128xf32, #tpu.memory_space<vmem>>, %arg3: memref<8x2x128xf32, #tpu.memory_space<vmem>>, %arg4: memref<2x128xf32, #tpu.memory_space<vmem>>) attributes {dimension_semantics = [#tpu.dimension_semantics<parallel>], iteration_bounds = array<i64: 1>, scalar_prefetch = 0 : i64, scratch_operands = 0 : i64, tpu.core_type = #tpu.core_type<tc>, window_params = [{transform_indices = @transform_0, window_bounds = array<i64: 8>}, {transform_indices = @transform_1, window_bounds = array<i64: 2, 128>}, {transform_indices = @transform_2, window_bounds = array<i64: 8, 2, 128>}, {transform_indices = @transform_3, window_bounds = array<i64: 2, 128>}]} {
    %c0 = arith.constant 0 : index
    %c0_0 = arith.constant 0 : index
    %0 = vector.load %arg2[%c0, %c0_0] : memref<2x128xf32, #tpu.memory_space<vmem>>, vector<2x128xf32>
    %c0_1 = arith.constant 0 : index
    %c0_2 = arith.constant 0 : index
    %c0_3 = arith.constant 0 : index
    %1 = vector.load %arg3[%c0_1, %c0_2, %c0_3] : memref<8x2x128xf32, #tpu.memory_space<vmem>>, vector<8x2x128xf32>
    %cst = arith.constant dense<0.000000e+00> : vector<2x128xf32>
    %2 = vector.multi_reduction <add>, %1, %cst [0] : vector<8x2x128xf32> to vector<2x128xf32>
    %c0_4 = arith.constant 0 : index
    %3 = memref.load %arg1[%c0_4] : memref<8xf32, #tpu.memory_space<smem>>
    %4 = vector.extract_strided_slice %0 {offsets = [0, 0], sizes = [1, 128], strides = [1, 1]} : vector<2x128xf32> to vector<1x128xf32>
    %5 = vector.broadcast %3 : f32 to vector<1x128xf32>
    %6 = arith.mulf %5, %4 : vector<1x128xf32>
    %c1 = arith.constant 1 : index
    %7 = memref.load %arg1[%c1] : memref<8xf32, #tpu.memory_space<smem>>
    %8 = vector.extract_strided_slice %0 {offsets = [1, 0], sizes = [1, 128], strides = [1, 1]} : vector<2x128xf32> to vector<1x128xf32>
    %9 = vector.broadcast %7 : f32 to vector<1x128xf32>
    %10 = arith.mulf %9, %8 : vector<1x128xf32>
    %11 = arith.addf %6, %10 : vector<1x128xf32>
    %c2 = arith.constant 2 : index
    %12 = memref.load %arg1[%c2] : memref<8xf32, #tpu.memory_space<smem>>
    %13 = vector.extract_strided_slice %2 {offsets = [0, 0], sizes = [1, 128], strides = [1, 1]} : vector<2x128xf32> to vector<1x128xf32>
    %14 = vector.broadcast %12 : f32 to vector<1x128xf32>
    %15 = arith.mulf %14, %13 : vector<1x128xf32>
    %16 = arith.addf %11, %15 : vector<1x128xf32>
    %c3 = arith.constant 3 : index
    %17 = memref.load %arg1[%c3] : memref<8xf32, #tpu.memory_space<smem>>
    %18 = vector.extract_strided_slice %2 {offsets = [1, 0], sizes = [1, 128], strides = [1, 1]} : vector<2x128xf32> to vector<1x128xf32>
    %19 = vector.broadcast %17 : f32 to vector<1x128xf32>
    %20 = arith.mulf %19, %18 : vector<1x128xf32>
    %21 = arith.addf %16, %20 : vector<1x128xf32>
    %c4 = arith.constant 4 : index
    %22 = memref.load %arg1[%c4] : memref<8xf32, #tpu.memory_space<smem>>
    %23 = vector.extract_strided_slice %0 {offsets = [0, 0], sizes = [1, 128], strides = [1, 1]} : vector<2x128xf32> to vector<1x128xf32>
    %24 = vector.broadcast %22 : f32 to vector<1x128xf32>
    %25 = arith.mulf %24, %23 : vector<1x128xf32>
    %c5 = arith.constant 5 : index
    %26 = memref.load %arg1[%c5] : memref<8xf32, #tpu.memory_space<smem>>
    %27 = vector.extract_strided_slice %0 {offsets = [1, 0], sizes = [1, 128], strides = [1, 1]} : vector<2x128xf32> to vector<1x128xf32>
    %28 = vector.broadcast %26 : f32 to vector<1x128xf32>
    %29 = arith.mulf %28, %27 : vector<1x128xf32>
    %30 = arith.addf %25, %29 : vector<1x128xf32>
    %c6 = arith.constant 6 : index
    %31 = memref.load %arg1[%c6] : memref<8xf32, #tpu.memory_space<smem>>
    %32 = vector.extract_strided_slice %2 {offsets = [0, 0], sizes = [1, 128], strides = [1, 1]} : vector<2x128xf32> to vector<1x128xf32>
    %33 = vector.broadcast %31 : f32 to vector<1x128xf32>
    %34 = arith.mulf %33, %32 : vector<1x128xf32>
    %35 = arith.addf %30, %34 : vector<1x128xf32>
    %c7 = arith.constant 7 : index
    %36 = memref.load %arg1[%c7] : memref<8xf32, #tpu.memory_space<smem>>
    %37 = vector.extract_strided_slice %2 {offsets = [1, 0], sizes = [1, 128], strides = [1, 1]} : vector<2x128xf32> to vector<1x128xf32>
    %38 = vector.broadcast %36 : f32 to vector<1x128xf32>
    %39 = arith.mulf %38, %37 : vector<1x128xf32>
    %40 = arith.addf %35, %39 : vector<1x128xf32>
    %41 = tpu.concatenate %21, %40 in 0 : vector<1x128xf32>, vector<1x128xf32> -> vector<2x128xf32>
    %c0_5 = arith.constant 0 : index
    %c0_6 = arith.constant 0 : index
    %42 = vector.load %arg4[%c0_5, %c0_6] : memref<2x128xf32, #tpu.memory_space<vmem>>, vector<2x128xf32>
    tpu.vector_store %arg4[%c0_5, %c0_6], %41 {strides = array<i32>} : memref<2x128xf32, #tpu.memory_space<vmem>>, vector<2x128xf32>,
    return
  }
  func.func @transform_0(%arg0: i32) -> i32 {
    %c0_i32 = arith.constant 0 : i32
    %c0_i32_0 = arith.constant 0 : i32
    return %c0_i32 : i32
  }
  func.func @transform_1(%arg0: i32) -> (i32, i32) {
    %c0_i32 = arith.constant 0 : i32
    %c0_i32_0 = arith.constant 0 : i32
    return %c0_i32, %arg0 : i32, i32
  }
  func.func @transform_2(%arg0: i32) -> (i32, i32, i32) {
    %c0_i32 = arith.constant 0 : i32
    %c0_i32_0 = arith.constant 0 : i32
    %c0_i32_1 = arith.constant 0 : i32
    return %c0_i32, %c0_i32_0, %arg0 : i32, i32, i32
  }
  func.func @transform_3(%arg0: i32) -> (i32, i32) {
    %c0_i32 = arith.constant 0 : i32
    %c0_i32_0 = arith.constant 0 : i32
    return %c0_i32, %arg0 : i32, i32
  }
}

</mosaic_0001>

<llo_original>
// kernel: tpu_custom_call.1
$region0: #{tpu_custom_call.1}
  #allocation0 [shape = 'u32[]', space=smem, size = 0x4, offset = 0x4, fixed_abs, tag = 'smem constant byte address 0x4 - core index']
  #allocation1 [shape = 'u32[144,128]{1,0:T(1,128)}', space=vmem, size = 0x12000, scoped, tag = 'internal scratch']
  %s0 = inlined_call_operand.hbm [shape: f32[8], index: 0, kind: input, shape index: {}]
  %s1 = inlined_call_operand.vmem [shape: f32[2,128], index: 1, kind: input, shape index: {}]
  %s2 = inlined_call_operand.hbm [shape: f32[8,2,128], index: 2, kind: input, shape index: {}]
  %s3 = inlined_call_operand.hbm [shape: f32[2,128], index: 3, kind: output, shape index: {}]
  %s4 = sld [smem:[#allocation0]]
  $region30: #{tpu_custom_call.1} parent=0
    _
  %s6 = ssub.s32 1, %s4
  %s7 = scalar_select 0, %s6, %s4
  $region1: #{tpu_custom_call.1} parent=0
    #allocation2 [shape = 'u8[512]{0}', space=smem, size = 0x200, scoped, tag = 'input window, operand 0, single buffered']
    #allocation3 [shape = 's32[1]{0}', space=sflag, size = 0x4, scoped, tag = 'scoped memory for tpu_custom_call.1']
    #allocation4 [shape = 's32[1]{0}', space=sflag, size = 0x4, scoped, tag = 'scoped memory for tpu_custom_call.1']
    #allocation5 [shape = 's32[1]{0}', space=sflag, size = 0x4, scoped, tag = 'scoped memory for tpu_custom_call.1']
    #allocation6 [shape = 'u8[8192]{0}', space=vmem, size = 0x2000, scoped, tag = 'input window, operand 2, single buffered']
    #allocation7 [shape = 'u8[1024]{0}', space=vmem, size = 0x400, scoped, tag = 'output window, operand 0, single buffered']
    %8 = vsyncpa [#allocation5], 0
    %9 = vsyncpa [#allocation3], 0
    %10 = vsyncpa [#allocation4], 0
    // Predicated region
    $region2: #{tpu_custom_call.1} parent=1 // pred_check
      _
    $region3: #{tpu_custom_call.1} parent=1 // pred_check_branch
      %12 = sbr.rel (0) target = $region5
    $region4: #{tpu_custom_call.1} parent=1 // pred_region
      %s14 = ssub.s32 16, 16
      %15 = vsyncadd [#allocation5], %s14
      %18 = dma.hbm_to_smem %s0, 16, [#allocation2], [#allocation5]
    $region5: #{tpu_custom_call.1} parent=1 // pred_fallthru
      _
    // Predicated region
    $region6: #{tpu_custom_call.1} parent=1 // pred_check
      _
    $region7: #{tpu_custom_call.1} parent=1 // pred_check_branch
      %20 = sbr.rel (0) target = $region9
    $region8: #{tpu_custom_call.1} parent=1 // pred_region
      _
    $region9: #{tpu_custom_call.1} parent=1 // pred_fallthru
      _
    // Predicated region
    $region10: #{tpu_custom_call.1} parent=1 // pred_check
      _
    $region11: #{tpu_custom_call.1} parent=1 // pred_check_branch
      %22 = sbr.rel (0) target = $region13
    $region12: #{tpu_custom_call.1} parent=1 // pred_region
      %s24 = ssub.s32 256, 256
      %25 = vsyncadd [#allocation3], %s24
      %s26 = sshll.u32 [#allocation6], 4
      %s27 = int_to_ptr.vmem [resolvable:$true] %s26
      %32 = dma.hbm_to_vmem [thread:$0]  %s2, 256, %s27, [#allocation3], 32, 32, 2
    $region13: #{tpu_custom_call.1} parent=1 // pred_fallthru
      _
    // Predicated region
    $region14: #{tpu_custom_call.1} parent=1 // pred_check
      _
    $region15: #{tpu_custom_call.1} parent=1 // pred_check_branch
      %34 = sbr.rel (0) target = $region17
    $region16: #{tpu_custom_call.1} parent=1 // pred_region
      %35 = dma.done [#allocation5], 16
    $region17: #{tpu_custom_call.1} parent=1 // pred_fallthru
      _
    // Predicated region
    $region18: #{tpu_custom_call.1} parent=1 // pred_check
      _
    $region19: #{tpu_custom_call.1} parent=1 // pred_check_branch
      %37 = sbr.rel (0) target = $region21
    $region20: #{tpu_custom_call.1} parent=1 // pred_region
      %38 = dma.done [#allocation3], 256
    $region21: #{tpu_custom_call.1} parent=1 // pred_fallthru
      _
    %39 = sfence
    %v40 = vld [vmem:[%s1] sm:$0x3]
    %v41 = vld [vmem:[#allocation6] sm:$0x3]
    %v42 = vld [vmem:[#allocation6 + $0x2] sm:$0x3]
    %v43 = vld [vmem:[#allocation6 + $0x4] sm:$0x3]
    %v44 = vld [vmem:[#allocation6 + $0x6] sm:$0x3]
    %v45 = vld [vmem:[#allocation6 + $0x8] sm:$0x3]
    %v46 = vld [vmem:[#allocation6 + $0xa] sm:$0x3]
    %v47 = vld [vmem:[#allocation6 + $0xc] sm:$0x3]
    %v48 = vld [vmem:[#allocation6 + $0xe] sm:$0x3]
    %vm49 = vcmask 1041408
    %v50 = vsel %vm49, %v41, 0.0
    %v51 = vsel %vm49, %v42, 0.0
    %v52 = vadd.f32 %v50, %v51
    %v53 = vsel %vm49, %v43, 0.0
    %v54 = vadd.f32 %v52, %v53
    %v55 = vsel %vm49, %v44, 0.0
    %v56 = vadd.f32 %v54, %v55
    %v57 = vsel %vm49, %v45, 0.0
    %v58 = vadd.f32 %v56, %v57
    %v59 = vsel %vm49, %v46, 0.0
    %v60 = vadd.f32 %v58, %v59
    %v61 = vsel %vm49, %v47, 0.0
    %v62 = vadd.f32 %v60, %v61
    %v63 = vsel %vm49, %v48, 0.0
    %v64 = vadd.f32 %v62, %v63
    %s65 = sld [smem:[#allocation2]]
    %v66 = vstv %s65
    %v67 = vmul.f32 %v66, %v40
    %s68 = sld [smem:[#allocation2 + $0x1]]
    %v69 = vstv %s68
    %v70 = vmul.f32 %v69, %v40
    %v72 = vrot.slane %v70, 1
    %v74 = vadd.f32 %v67, %v72
    %s75 = sld [smem:[#allocation2 + $0x2]]
    %v76 = vstv %s75
    %v77 = vmul.f32 %v76, %v64
    %v78 = vadd.f32 %v74, %v77
    %s79 = sld [smem:[#allocation2 + $0x3]]
    %v80 = vstv %s79
    %v81 = vmul.f32 %v80, %v64
    %v83 = vrot.slane %v81, 1
    %v85 = vadd.f32 %v78, %v83
    %s86 = sld [smem:[#allocation2 + $0x4]]
    %v87 = vstv %s86
    %v88 = vmul.f32 %v87, %v40
    %s89 = sld [smem:[#allocation2 + $0x5]]
    %v90 = vstv %s89
    %v91 = vmul.f32 %v90, %v40
    %v93 = vrot.slane %v91, 1
    %v95 = vadd.f32 %v88, %v93
    %s96 = sld [smem:[#allocation2 + $0x6]]
    %v97 = vstv %s96
    %v98 = vmul.f32 %v97, %v64
    %v99 = vadd.f32 %v95, %v98
    %s100 = sld [smem:[#allocation2 + $0x7]]
    %v101 = vstv %s100
    %v102 = vmul.f32 %v101, %v64
    %v104 = vrot.slane %v102, 1
    %v106 = vadd.f32 %v99, %v104
    %v108 = vrot.slane %v106, 7
    %vm110 = vcmask 1040384
    %v111 = vsel %vm110, %v85, %v108
    %112 = vst [vmem:[#allocation7] sm:$0x3] %v111
    // Predicated region
    $region22: #{tpu_custom_call.1} parent=1 // pred_check
      _
    $region23: #{tpu_custom_call.1} parent=1 // pred_check_branch
      %114 = sbr.rel (0) target = $region25
    $region24: #{tpu_custom_call.1} parent=1 // pred_region
      %s116 = ssub.s32 32, 32
      %117 = vsyncadd [#allocation4], %s116
      %s119 = sshll.u32 [#allocation7], 4
      %s120 = int_to_ptr.vmem [resolvable:$true] %s119
      %122 = dma.vmem_to_hbm [thread:$0]  %s120, 32, %s3, [#allocation4]
    $region25: #{tpu_custom_call.1} parent=1 // pred_fallthru
      _
    // Predicated region
    $region26: #{tpu_custom_call.1} parent=1 // pred_check
      _
    $region27: #{tpu_custom_call.1} parent=1 // pred_check_branch
      %124 = sbr.rel (0) target = $region29
    $region28: #{tpu_custom_call.1} parent=1 // pred_region
      %125 = dma.done [#allocation4], 32
    $region29: #{tpu_custom_call.1} parent=1 // pred_fallthru
      _
    %126 = vsyncpa [#allocation3], 1
    %127 = vsyncpa [#allocation4], 1
    %128 = vsyncpa [#allocation5], 1

</llo_original>
